<compile_context>
chip_gen: v7x
topology: tpu7x:2x2x1
jax: 0.10.0
libtpu: 0.0.40
codegen_flags: <defaults>
</compile_context>

<pallas_src>
import functools
import math

import jax
import jax.numpy as jnp
from jax.experimental import pallas as pl
from jax.experimental.pallas import tpu as pltpu


def _cdiv(a, b):
    return -(-a // b)


def _round_up(x, m):
    return _cdiv(x, m) * m


def _sublane(dtype):
    # Minimum second-to-last block dim for a non-full-dim block of this dtype.
    return {1: 32, 2: 16}.get(jnp.dtype(dtype).itemsize, 8)


def _vmem_capacity_bytes():
    try:
        return int(pltpu.get_tpu_info().vmem_capacity_bytes)
    except Exception:
        return 128 * 1024 * 1024  # v5e/v6e physical VMEM; conservative fallback


def _choose_batch_tile(B, block_b, sublane):
    """Rows per grid step.

    Goals: (a) balanced tiles (no ~tb-1 wasted rows in the last tile),
    (b) >= 2 grid steps for batches big enough to split, so the "parallel"
    batch axis can shard across v7x's two TensorCores, (c) sublane-aligned
    block dim unless a single block covers the full batch dim (always legal).
    """
    block_b = max(sublane, (block_b // sublane) * sublane)
    if B <= sublane:
        return B  # single block == full (possibly unaligned) batch dim
    cap = block_b
    if B >= 2 * sublane:
        cap = min(cap, _round_up(_cdiv(B, 2), sublane))  # leave room for >=2 steps
    n_steps = _cdiv(B, cap)
    return min(_round_up(_cdiv(B, n_steps), sublane), cap)


# --------------------------------------------------------------------------- #
# Kernels
# --------------------------------------------------------------------------- #
def _mlp_head_kernel(x_ref, w1_ref, b1_ref, w2_ref, b2_ref, o_ref):
    # x_ref : [tb, F]   one batch tile of the flattened input
    # w1_ref: [F,  Hp]  b1_ref: [1, Hp]   (index-invariant across grid steps)
    # w2_ref: [Hp, Op]  b2_ref: [1, Op]
    # o_ref : [tb, Op]
    x = x_ref[...].astype(w1_ref.dtype)  # per-tile VPU cast; native-dtype MXU dot
    h = jnp.dot(x, w1_ref[...], preferred_element_type=jnp.float32) + b1_ref[...]
    h = jnp.maximum(h, 0.0).astype(w2_ref.dtype)  # ReLU
    o = jnp.dot(h, w2_ref[...], preferred_element_type=jnp.float32) + b2_ref[...]
    o_ref[...] = o.astype(o_ref.dtype)


def _mlp_head_kernel_ktiled(x_ref, w1_ref, b1_ref, w2_ref, b2_ref, o_ref,
                            acc_ref, *, f_total):
    # Grid = (batch tiles, K tiles); K (flattened-feature reduction) is the
    # innermost "arbitrary" axis.  acc_ref: f32 [tb, Hp] accumulator scratch.
    k = pl.program_id(1)

    @pl.when(k == 0)
    def _():
        acc_ref[...] = jnp.zeros_like(acc_ref)

    x = x_ref[...].astype(w1_ref.dtype)
    w1 = w1_ref[...]
    tk = x.shape[1]
    if f_total % tk:
        # Ragged last K tile: zero out-of-range columns/rows (the garbage in a
        # partial block could be NaN/Inf and would poison the accumulator).
        valid = f_total - k * tk
        x = jnp.where(jax.lax.broadcasted_iota(jnp.int32, x.shape, 1) < valid, x, 0)
        w1 = jnp.where(jax.lax.broadcasted_iota(jnp.int32, w1.shape, 0) < valid, w1, 0)
    acc_ref[...] += jnp.dot(x, w1, preferred_element_type=jnp.float32)

    @pl.when(k == pl.num_programs(1) - 1)
    def _():
        h = jnp.maximum(acc_ref[...] + b1_ref[...], 0.0).astype(w2_ref.dtype)
        o = jnp.dot(h, w2_ref[...], preferred_element_type=jnp.float32) + b2_ref[...]
        o_ref[...] = o.astype(o_ref.dtype)


# --------------------------------------------------------------------------- #
# Parameter prep (one-time, NOT in the per-call hot path)
# --------------------------------------------------------------------------- #
def prepare_mlp_head_params(w1, b1, w2, b2, dtype=jnp.bfloat16):
    """Transpose PyTorch-layout weights [out, in] -> [in, out], zero-pad only the
    matmul *output* dims (hidden, out) to multiples of 128 (lane-dense MXU results
    and stores), and cast weights to `dtype` (bfloat16 by default: halves weight
    HBM bytes; use jnp.float32 for bit-exactness with the f32 PyTorch module).
    The contraction dim F = C*H*W is left unpadded so activations never need
    padding at call time.  Biases stay f32 (they add into the f32 accumulator).
    Zero padding is exact: padded hidden units are ReLU(0)=0 and meet zero rows
    of w2; padded output columns are sliced away by the wrapper."""
    Hd, F_in = w1.shape
    O = w2.shape[0]
    Hp = _round_up(Hd, 128)
    Op = _round_up(O, 128)

    w1_t = jnp.zeros((F_in, Hp), dtype).at[:, :Hd].set(jnp.transpose(w1).astype(dtype))
    b1_p = jnp.zeros((1, Hp), jnp.float32).at[0, :Hd].set(b1.astype(jnp.float32))
    w2_t = jnp.zeros((Hp, Op), dtype).at[:Hd, :O].set(jnp.transpose(w2).astype(dtype))
    b2_p = jnp.zeros((1, Op), jnp.float32).at[0, :O].set(b2.astype(jnp.float32))
    return w1_t, b1_p, w2_t, b2_p


# --------------------------------------------------------------------------- #
# Forward wrapper
# --------------------------------------------------------------------------- #
@functools.partial(jax.jit, static_argnames=("out_features", "block_b", "k_block"))
def mlp_head_forward(x_nchw, w1_t, b1_p, w2_t, b2_p, *,
                     out_features, block_b=512, k_block=None):
    """MLPHead.forward.  x_nchw: [..., C, H, W]; params from
    prepare_mlp_head_params.  Returns [..., out_features] float32.
    `k_block` (multiple of 128) forces the K-tiled fallback path."""
    lead = x_nchw.shape[:-3]
    F_in = x_nchw.shape[-3] * x_nchw.shape[-2] * x_nchw.shape[-1]
    B = math.prod(lead)

    Fw, Hp = w1_t.shape
    Op = w2_t.shape[1]
    if Fw != F_in:
        raise ValueError(f"w1 expects {Fw} input features, got {F_in}")

    # Flatten(-3, -1); no dtype change, no padding, no extra HBM round trip.
    x_flat = x_nchw.reshape(B, F_in)
    x_isz = jnp.dtype(x_flat.dtype).itemsize
    w_isz = jnp.dtype(w1_t.dtype).itemsize

    tb = _choose_batch_tile(B, block_b, _sublane(x_flat.dtype))
    nb = _cdiv(B, tb)

    # Per-generation VMEM budget (64 MiB on v7x, 128 MiB on v5e/v6e) with headroom.
    budget = _vmem_capacity_bytes() - (8 << 20)

    # Conservative accounting: index-invariant ("resident") blocks may still be
    # allocated double-buffered, so count weights 2x.  (Alternative: pin them
    # with pipeline_mode=pl.Buffered(1).)
    def fused_bytes(tb_):
        return (2 * tb_ * F_in * x_isz                 # x tiles (double-buffered)
                + 2 * (F_in * Hp + Hp * Op) * w_isz    # weights (counted 2x)
                + 2 * (Hp + Op) * 4                    # biases
                + 2 * tb_ * Op * 4                     # output tiles
                + tb_ * Hp * 4)                        # hidden intermediate

    def ktiled_bytes(tb_, tk_):
        return (2 * tb_ * tk_ * x_isz + 2 * tk_ * Hp * w_isz
                + 2 * Hp * Op * w_isz + 2 * (Hp + Op) * 4
                + 2 * tb_ * Op * 4 + tb_ * Hp * 4)

    flops = 2 * B * (F_in * Hp + Hp * Op)
    bytes_accessed = (B * F_in * x_isz + (F_in * Hp + Hp * Op) * w_isz
                      + (Hp + Op) * 4 + B * Op * 4)
    cost = pl.CostEstimate(flops=int(flops), transcendentals=0,
                           bytes_accessed=int(bytes_accessed))

    use_ktiled = (k_block is not None) or (fused_bytes(tb) > budget)

    if not use_ktiled:
        vmem = int(min(max(fused_bytes(tb) + (2 << 20), 16 << 20), budget))
        out_p = pl.pallas_call(
            _mlp_head_kernel,
            out_shape=jax.ShapeDtypeStruct((B, Op), jnp.float32),
            grid=(nb,),
            in_specs=[
                pl.BlockSpec((tb, F_in), lambda i: (i, 0)),  # batch tile of x
                pl.BlockSpec((F_in, Hp), lambda i: (0, 0)),  # w1 resident
                pl.BlockSpec((1, Hp), lambda i: (0, 0)),     # b1 resident
                pl.BlockSpec((Hp, Op), lambda i: (0, 0)),    # w2 resident
                pl.BlockSpec((1, Op), lambda i: (0, 0)),     # b2 resident
            ],
            out_specs=pl.BlockSpec((tb, Op), lambda i: (i, 0)),
            compiler_params=pltpu.CompilerParams(
                dimension_semantics=("parallel",),  # shard batch tiles on v7x
                vmem_limit_bytes=vmem),
            cost_estimate=cost,
        )(x_flat, w1_t, b1_p, w2_t, b2_p)
    else:
        # K-tiled fallback: stream w1 over a reduction grid axis.
        if k_block is not None:
            tk = int(k_block)
        else:
            tk = 128
            for cand in (2048, 1024, 512, 256, 128):
                if cand <= _round_up(F_in, 128) and ktiled_bytes(tb, cand) <= budget:
                    tk = cand
                    break
        tk = min(tk, F_in)
        if tk < F_in and tk % 128:
            raise ValueError("k_block must be a multiple of 128")
        # TODO(synk): if Hp*Op alone exceeds the VMEM budget, a second (hidden-dim)
        # reduction axis over w2 would be needed; not required for MLPHead sizes.
        nk = _cdiv(F_in, tk)
        vmem = int(min(max(ktiled_bytes(tb, tk) + (2 << 20), 16 << 20), budget))
        out_p = pl.pallas_call(
            functools.partial(_mlp_head_kernel_ktiled, f_total=F_in),
            out_shape=jax.ShapeDtypeStruct((B, Op), jnp.float32),
            grid=(nb, nk),
            in_specs=[
                pl.BlockSpec((tb, tk), lambda i, k: (i, k)),
                pl.BlockSpec((tk, Hp), lambda i, k: (k, 0)),
                pl.BlockSpec((1, Hp), lambda i, k: (0, 0)),
                pl.BlockSpec((Hp, Op), lambda i, k: (0, 0)),
                pl.BlockSpec((1, Op), lambda i, k: (0, 0)),
            ],
            out_specs=pl.BlockSpec((tb, Op), lambda i, k: (i, 0)),
            scratch_shapes=[pltpu.VMEM((tb, Hp), jnp.float32)],
            compiler_params=pltpu.CompilerParams(
                dimension_semantics=("parallel", "arbitrary"),
                vmem_limit_bytes=vmem),
            cost_estimate=cost,
        )(x_flat, w1_t, b1_p, w2_t, b2_p)

    return out_p[:, :out_features].reshape(lead + (out_features,))


# --------------------------------------------------------------------------- #
# Init matching MLPHead.__init__ (noisy=0) + plain-JAX reference
# --------------------------------------------------------------------------- #
def init_mlp_head_params(key, input_channels, pixels, output_size, hidden_size=-1):
    """kaiming_uniform_(nonlinearity='linear') -> U(-sqrt(3/fan_in), sqrt(3/fan_in)),
    biases zeroed by weights_init.  Returned in PyTorch layout [out, in]."""
    if hidden_size <= 0:
        hidden_size = input_channels * pixels
    in_features = input_channels * pixels
    k1, k2 = jax.random.split(key)
    bound1 = (3.0 / in_features) ** 0.5
    w1 = jax.random.uniform(k1, (hidden_size, in_features), jnp.float32,
                            minval=-bound1, maxval=bound1)
    b1 = jnp.zeros((hidden_size,), jnp.float32)
    bound2 = (3.0 / hidden_size) ** 0.5
    w2 = jax.random.uniform(k2, (output_size, hidden_size), jnp.float32,
                            minval=-bound2, maxval=bound2)
    b2 = jnp.zeros((output_size,), jnp.float32)
    return w1, b1, w2, b2


def _reference(x, w1, b1, w2, b2, dtype):
    """Plain-JAX reference of MLPHead.forward with the kernel's dtype rounding
    (inputs/weights/hidden rounded to `dtype`, f32 accumulation)."""
    f32 = jnp.float32
    xf = x.reshape(x.shape[0], -1).astype(dtype).astype(f32)
    w1d = w1.astype(dtype).astype(f32)
    w2d = w2.astype(dtype).astype(f32)
    h = jnp.maximum(xf @ w1d.T + b1, 0.0).astype(dtype).astype(f32)
    return h @ w2d.T + b2


if __name__ == "__main__":
    key = jax.random.PRNGKey(0)
    k_x, k_p, k_x2, k_p2 = jax.random.split(key, 4)

    # --- Case 1: module defaults (pixels = 5*6 = 30, hidden_size=-1 -> C*pixels=120)
    B, C, H, W = 2, 4, 5, 6
    output_size = 8
    x = jax.random.normal(k_x, (B, C, H, W), jnp.float32)
    w1, b1, w2, b2 = init_mlp_head_params(
        k_p, input_channels=C, pixels=H * W, output_size=output_size, hidden_size=-1)

    # (a) float32 params: numerically matches the f32 PyTorch module.
    params_f32 = prepare_mlp_head_params(w1, b1, w2, b2, dtype=jnp.float32)
    out_f32 = jax.block_until_ready(
        mlp_head_forward(x, *params_f32, out_features=output_size))
    ref_f32 = _reference(x, w1, b1, w2, b2, jnp.float32)
    assert out_f32.shape == (B, output_size)
    assert jnp.allclose(out_f32, ref_f32, atol=2e-3, rtol=2e-3), \
        float(jnp.max(jnp.abs(out_f32 - ref_f32)))

    # (b) bf16 weight streaming (default, recommended): compare against a
    #     reference applying the same bf16 rounding (f32 accumulation in both).
    params_bf16 = prepare_mlp_head_params(w1, b1, w2, b2)
    out_bf16 = jax.block_until_ready(
        mlp_head_forward(x, *params_bf16, out_features=output_size))
    ref_bf16 = _reference(x, w1, b1, w2, b2, jnp.bfloat16)
    assert out_bf16.shape == (B, output_size)
    assert jnp.allclose(out_bf16, ref_bf16, atol=1e-2, rtol=1e-2), \
        float(jnp.max(jnp.abs(out_bf16 - ref_bf16)))

    # --- Case 2: exercise the K-tiled fallback (forced), including a ragged last
    #     K tile (F = 3*10*10 = 300 is not a multiple of the 128 K block).
    B2, C2, H2, W2 = 4, 3, 10, 10
    out2 = 6
    x2 = jax.random.normal(k_x2, (B2, C2, H2, W2), jnp.float32)
    w1b, b1b, w2b, b2b = init_mlp_head_params(
        k_p2, input_channels=C2, pixels=H2 * W2, output_size=out2, hidden_size=-1)
    params2 = prepare_mlp_head_params(w1b, b1b, w2b, b2b)
    out_kt = jax.block_until_ready(
        mlp_head_forward(x2, *params2, out_features=out2, k_block=128))
    ref_kt = _reference(x2, w1b, b1b, w2b, b2b, jnp.bfloat16)
    assert out_kt.shape == (B2, out2)
    assert jnp.allclose(out_kt, ref_kt, atol=1e-2, rtol=1e-2), \
        float(jnp.max(jnp.abs(out_kt - ref_kt)))

    print("KERNEL_OK")
</pallas_src>

<mosaic_0001>
module attributes {stable_mosaic.version = 11 : i64} {
  func.func @_mlp_head_kernel(%arg0: i32, %arg1: memref<2x120xf32, #tpu.memory_space<vmem>>, %arg2: memref<120x128xf32, #tpu.memory_space<vmem>>, %arg3: memref<1x128xf32, #tpu.memory_space<vmem>>, %arg4: memref<128x128xf32, #tpu.memory_space<vmem>>, %arg5: memref<1x128xf32, #tpu.memory_space<vmem>>, %arg6: memref<2x128xf32, #tpu.memory_space<vmem>>) attributes {dimension_semantics = [#tpu.dimension_semantics<parallel>], iteration_bounds = array<i64: 1>, scalar_prefetch = 0 : i64, scratch_operands = 0 : i64, tpu.core_type = #tpu.core_type<tc>, window_params = [{transform_indices = @transform_0, window_bounds = array<i64: 2, 120>}, {pipeline_mode = #tpu.pipeline_mode<synchronous>, transform_indices = @transform_1, window_bounds = array<i64: 120, 128>}, {pipeline_mode = #tpu.pipeline_mode<synchronous>, transform_indices = @transform_2, window_bounds = array<i64: 1, 128>}, {pipeline_mode = #tpu.pipeline_mode<synchronous>, transform_indices = @transform_3, window_bounds = array<i64: 128, 128>}, {pipeline_mode = #tpu.pipeline_mode<synchronous>, transform_indices = @transform_4, window_bounds = array<i64: 1, 128>}, {transform_indices = @transform_5, window_bounds = array<i64: 2, 128>}]} {
    %c0 = arith.constant 0 : index
    %c0_0 = arith.constant 0 : index
    %0 = vector.load %arg1[%c0, %c0_0] : memref<2x120xf32, #tpu.memory_space<vmem>>, vector<2x120xf32>
    %c0_1 = arith.constant 0 : index
    %c0_2 = arith.constant 0 : index
    %1 = vector.load %arg2[%c0_1, %c0_2] : memref<120x128xf32, #tpu.memory_space<vmem>>, vector<120x128xf32>
    %cst = arith.constant dense<0.000000e+00> : vector<2x128xf32>
    %2 = tpu.matmul %0, %1, %cst {dimension_numbers = #tpu.dot_dimension_numbers<[1], [0], [0], [1], [0, 0, 1, 1], [], []>} : vector<2x120xf32>, vector<120x128xf32>, vector<2x128xf32> -> vector<2x128xf32>
    %c0_3 = arith.constant 0 : index
    %c0_4 = arith.constant 0 : index
    %3 = vector.load %arg3[%c0_3, %c0_4] : memref<1x128xf32, #tpu.memory_space<vmem>>, vector<1x128xf32>
    %4 = vector.broadcast %3 : vector<1x128xf32> to vector<2x128xf32>
    %5 = arith.addf %2, %4 : vector<2x128xf32>
    %cst_5 = arith.constant 0.000000e+00 : f32
    %6 = vector.broadcast %cst_5 : f32 to vector<2x128xf32>
    %7 = arith.maximumf %5, %6 : vector<2x128xf32>
    %c0_6 = arith.constant 0 : index
    %c0_7 = arith.constant 0 : index
    %8 = vector.load %arg4[%c0_6, %c0_7] : memref<128x128xf32, #tpu.memory_space<vmem>>, vector<128x128xf32>
    %cst_8 = arith.constant dense<0.000000e+00> : vector<2x128xf32>
    %9 = tpu.matmul %7, %8, %cst_8 {dimension_numbers = #tpu.dot_dimension_numbers<[1], [0], [0], [1], [0, 0, 1, 1], [], []>} : vector<2x128xf32>, vector<128x128xf32>, vector<2x128xf32> -> vector<2x128xf32>
    %c0_9 = arith.constant 0 : index
    %c0_10 = arith.constant 0 : index
    %10 = vector.load %arg5[%c0_9, %c0_10] : memref<1x128xf32, #tpu.memory_space<vmem>>, vector<1x128xf32>
    %11 = vector.broadcast %10 : vector<1x128xf32> to vector<2x128xf32>
    %12 = arith.addf %9, %11 : vector<2x128xf32>
    %c0_11 = arith.constant 0 : index
    %c0_12 = arith.constant 0 : index
    %13 = vector.load %arg6[%c0_11, %c0_12] : memref<2x128xf32, #tpu.memory_space<vmem>>, vector<2x128xf32>
    tpu.vector_store %arg6[%c0_11, %c0_12], %12 {strides = array<i32>} : memref<2x128xf32, #tpu.memory_space<vmem>>, vector<2x128xf32>,
    return
  }
  func.func @transform_0(%arg0: i32) -> (i32, i32) {
    %c0_i32 = arith.constant 0 : i32
    %c0_i32_0 = arith.constant 0 : i32
    return %arg0, %c0_i32 : i32, i32
  }
  func.func @transform_1(%arg0: i32) -> (i32, i32) {
    %c0_i32 = arith.constant 0 : i32
    %c0_i32_0 = arith.constant 0 : i32
    %c0_i32_1 = arith.constant 0 : i32
    return %c0_i32, %c0_i32_0 : i32, i32
  }
  func.func @transform_2(%arg0: i32) -> (i32, i32) {
    %c0_i32 = arith.constant 0 : i32
    %c0_i32_0 = arith.constant 0 : i32
    %c0_i32_1 = arith.constant 0 : i32
    return %c0_i32, %c0_i32_0 : i32, i32
  }
  func.func @transform_3(%arg0: i32) -> (i32, i32) {
    %c0_i32 = arith.constant 0 : i32
    %c0_i32_0 = arith.constant 0 : i32
    %c0_i32_1 = arith.constant 0 : i32
    return %c0_i32, %c0_i32_0 : i32, i32
  }
  func.func @transform_4(%arg0: i32) -> (i32, i32) {
    %c0_i32 = arith.constant 0 : i32
    %c0_i32_0 = arith.constant 0 : i32
    %c0_i32_1 = arith.constant 0 : i32
    return %c0_i32, %c0_i32_0 : i32, i32
  }
  func.func @transform_5(%arg0: i32) -> (i32, i32) {
    %c0_i32 = arith.constant 0 : i32
    %c0_i32_0 = arith.constant 0 : i32
    return %arg0, %c0_i32 : i32, i32
  }
}

</mosaic_0001>

<llo_original>
// kernel: mlp_head_forward.1
$region0: #{mlp_head_forward.1}
  #allocation0 [shape = 'u32[]', space=smem, size = 0x4, offset = 0x4, fixed_abs, tag = 'smem constant byte address 0x4 - core index']
  #allocation1 [shape = 'u32[144,128]{1,0:T(1,128)}', space=vmem, size = 0x12000, scoped, tag = 'internal scratch']
  %s0 = inlined_call_operand.vmem [shape: f32[2,120], index: 0, kind: input, shape index: {}]
  %s1 = inlined_call_operand.hbm [shape: f32[120,128], index: 1, kind: input, shape index: {}]
  %s2 = inlined_call_operand.vmem [shape: f32[1,128], index: 2, kind: input, shape index: {}]
  %s3 = inlined_call_operand.vmem [shape: f32[128,128], index: 3, kind: input, shape index: {}]
  %s4 = inlined_call_operand.vmem [shape: f32[1,128], index: 4, kind: input, shape index: {}]
  %s5 = inlined_call_operand.hbm [shape: f32[2,128], index: 5, kind: output, shape index: {}]
  %s6 = sld [smem:[#allocation0]]
  $region34: #{mlp_head_forward.1} parent=0
    _
  %s8 = ssub.s32 1, %s6
  %s9 = scalar_select 0, %s8, %s6
  $region1: #{mlp_head_forward.1} parent=0
    #allocation2 [shape = 'u8[61440]{0}', space=vmem, size = 0xf000, scoped, tag = 'input window, operand 1, single buffered']
    #allocation3 [shape = 's32[1]{0}', space=sflag, size = 0x4, scoped, tag = 'scoped memory for mlp_head_forward.1']
    #allocation4 [shape = 's32[1]{0}', space=sflag, size = 0x4, scoped, tag = 'scoped memory for mlp_head_forward.1']
    #allocation5 [shape = 'u8[1024]{0}', space=vmem, size = 0x400, scoped, tag = 'output window, operand 0, single buffered']
    %10 = vsyncpa [#allocation3], 0
    %11 = vsyncpa [#allocation4], 0
    // Predicated region
    $region2: #{mlp_head_forward.1} parent=1 // pred_check
      _
    $region3: #{mlp_head_forward.1} parent=1 // pred_check_branch
      %13 = sbr.rel (0) target = $region5
    $region4: #{mlp_head_forward.1} parent=1 // pred_region
      _
    $region5: #{mlp_head_forward.1} parent=1 // pred_fallthru
      _
    // Predicated region
    $region6: #{mlp_head_forward.1} parent=1 // pred_check
      _
    $region7: #{mlp_head_forward.1} parent=1 // pred_check_branch
      %15 = sbr.rel (0) target = $region9
    $region8: #{mlp_head_forward.1} parent=1 // pred_region
      %s17 = ssub.s32 1920, 1920
      %18 = vsyncadd [#allocation3], %s17
      %s19 = sshll.u32 [#allocation2], 4
      %s20 = int_to_ptr.vmem [resolvable:$true] %s19
      %25 = dma.hbm_to_vmem [thread:$0]  %s1, 1920, %s20, [#allocation3], 128, 128, 8
    $region9: #{mlp_head_forward.1} parent=1 // pred_fallthru
      _
    // Predicated region
    $region10: #{mlp_head_forward.1} parent=1 // pred_check
      _
    $region11: #{mlp_head_forward.1} parent=1 // pred_check_branch
      %27 = sbr.rel (0) target = $region13
    $region12: #{mlp_head_forward.1} parent=1 // pred_region
      _
    $region13: #{mlp_head_forward.1} parent=1 // pred_fallthru
      _
    // Predicated region
    $region14: #{mlp_head_forward.1} parent=1 // pred_check
      _
    $region15: #{mlp_head_forward.1} parent=1 // pred_check_branch
      %29 = sbr.rel (0) target = $region17
    $region16: #{mlp_head_forward.1} parent=1 // pred_region
      _
    $region17: #{mlp_head_forward.1} parent=1 // pred_fallthru
      _
    // Predicated region
    $region18: #{mlp_head_forward.1} parent=1 // pred_check
      _
    $region19: #{mlp_head_forward.1} parent=1 // pred_check_branch
      %31 = sbr.rel (0) target = $region21
    $region20: #{mlp_head_forward.1} parent=1 // pred_region
      _
    $region21: #{mlp_head_forward.1} parent=1 // pred_fallthru
      _
    // Predicated region
    $region22: #{mlp_head_forward.1} parent=1 // pred_check
      _
    $region23: #{mlp_head_forward.1} parent=1 // pred_check_branch
      %33 = sbr.rel (0) target = $region25
    $region24: #{mlp_head_forward.1} parent=1 // pred_region
      %34 = dma.done [#allocation3], 1920
    $region25: #{mlp_head_forward.1} parent=1 // pred_fallthru
      _
    %v35 = vld [vmem:[%s0] sm:$0x3]
    %v36 = vld [vmem:[#allocation2] sm:$0xff]
    %v37 = vld [vmem:[#allocation2 + $0x8] sm:$0xff]
    %v38 = vld [vmem:[#allocation2 + $0x10] sm:$0xff]
    %v39 = vld [vmem:[#allocation2 + $0x18] sm:$0xff]
    %v40 = vld [vmem:[#allocation2 + $0x20] sm:$0xff]
    %v41 = vld [vmem:[#allocation2 + $0x28] sm:$0xff]
    %v42 = vld [vmem:[#allocation2 + $0x30] sm:$0xff]
    %v43 = vld [vmem:[#allocation2 + $0x38] sm:$0xff]
    %v44 = vld [vmem:[#allocation2 + $0x40] sm:$0xff]
    %v45 = vld [vmem:[#allocation2 + $0x48] sm:$0xff]
    %v46 = vld [vmem:[#allocation2 + $0x50] sm:$0xff]
    %v47 = vld [vmem:[#allocation2 + $0x58] sm:$0xff]
    %v48 = vld [vmem:[#allocation2 + $0x60] sm:$0xff]
    %v49 = vld [vmem:[#allocation2 + $0x68] sm:$0xff]
    %v50 = vld [vmem:[#allocation2 + $0x70] sm:$0xff]
    %v51 = vld [vmem:[%s2] sm:$0x1]
    %v53 = vlaneseq
    %v54 = vshrl.u32 %v53, 7
    %v55 = vsub.s32 0, %v54
    %v56 = vrot.slane %v51, %v55
    %vm58 = vcmask 982016
    %v60 = vsel %vm58, %v35, 0
    %62 = vmatprep.subr.mxu0 0.0
    %63 = vmatpush1.msra.mxu0 %v36
    %64 = vmatprep.subr.mxu0 0.0
    %65 = vmatpush1.msra.mxu0 %v37
    %66 = vmatprep.subr.mxu0 0.0
    %67 = vmatpush1.msra.mxu0 %v38
    %68 = vmatprep.subr.mxu0 0.0
    %69 = vmatpush1.msra.mxu0 %v39
    %70 = vmatprep.subr.mxu0 0.0
    %71 = vmatpush1.msra.mxu0 %v40
    %72 = vmatprep.subr.mxu0 0.0
    %73 = vmatpush1.msra.mxu0 %v41
    %74 = vmatprep.subr.mxu0 0.0
    %75 = vmatpush1.msra.mxu0 %v42
    %76 = vmatprep.subr.mxu0 0.0
    %77 = vmatpush1.msra.mxu0 %v43
    %78 = vmatprep.subr.mxu0 0.0
    %79 = vmatpush1.msra.mxu0 %v44
    %80 = vmatprep.subr.mxu0 0.0
    %81 = vmatpush1.msra.mxu0 %v45
    %82 = vmatprep.subr.mxu0 0.0
    %83 = vmatpush1.msra.mxu0 %v46
    %84 = vmatprep.subr.mxu0 0.0
    %85 = vmatpush1.msra.mxu0 %v47
    %86 = vmatprep.subr.mxu0 0.0
    %87 = vmatpush1.msra.mxu0 %v48
    %88 = vmatprep.subr.mxu0 0.0
    %89 = vmatpush1.msra.mxu0 %v49
    %90 = vmatprep.subr.mxu0 0.0
    %91 = vmatpush1.msra.mxu0 %v50
    %92 = vmatprep.subr.mxu0 0.0
    %93 = vmatpush1.msra.mxu0 0.0
    %94 = vmatprep.subr.mxu0 0.0
    %95 = vmatpush1.msra.mxu0 0.0
    %96 = vmatprep.subr.mxu0 0.0
    %97 = vmatpush1.msra.mxu0 0.0
    %98 = vmatprep.subr.mxu0 0.0
    %99 = vmatpush1.msra.mxu0 0.0
    %100 = vmatprep.subr.mxu0 0.0
    %101 = vmatpush1.msra.mxu0 0.0
    %102 = vmatprep.subr.mxu0 0.0
    %103 = vmatpush1.msra.mxu0 0.0
    %104 = vmatprep.subr.mxu0 0.0
    %105 = vmatpush1.msra.mxu0 0.0
    %106 = vmatprep.subr.mxu0 0.0
    %107 = vmatpush1.msra.mxu0 0.0
    %108 = vmatprep.subr.mxu0 0.0
    %109 = vmatpush1.msra.mxu0 0.0
    %110 = vmatprep.subr.mxu0 0.0
    %111 = vmatpush1.msra.mxu0 0.0
    %112 = vmatprep.subr.mxu0 0.0
    %113 = vmatpush1.msra.mxu0 0.0
    %114 = vmatprep.subr.mxu0 0.0
    %115 = vmatpush1.msra.mxu0 0.0
    %116 = vmatprep.subr.mxu0 0.0
    %117 = vmatpush1.msra.mxu0 0.0
    %118 = vmatprep.subr.mxu0 0.0
    %119 = vmatpush1.msra.mxu0 0.0
    %120 = vmatprep.subr.mxu0 0.0
    %121 = vmatpush1.msra.mxu0 0.0
    %122 = vmatprep.subr.mxu0 0.0
    %123 = vmatpush1.msra.mxu0 0.0
    %124 = vmatprep.subr.mxu0 0.0
    %125 = vmatpush1.msra.mxu0 0.0
    %126 = vmatprep.mubr.f32.mxu0 0.0
    %127 = vmatmul.mubr.f32.gmra.mrb[0].mxu0 %v60
    %v128 = vpop.f32.mrb[0].mxu0
    %v129 = vadd.f32 %v56, %v128
    %v130 = vpop.f32.mrb[0].mxu0
    %131 = vdwg.mxu0
    %v132 = vmax.f32 %v129, 0.0
    %v133 = vld [vmem:[%s3] sm:$0xff]
    %v134 = vld [vmem:[%s3 + $0x8] sm:$0xff]
    %v135 = vld [vmem:[%s3 + $0x10] sm:$0xff]
    %v136 = vld [vmem:[%s3 + $0x18] sm:$0xff]
    %v137 = vld [vmem:[%s3 + $0x20] sm:$0xff]
    %v138 = vld [vmem:[%s3 + $0x28] sm:$0xff]
    %v139 = vld [vmem:[%s3 + $0x30] sm:$0xff]
    %v140 = vld [vmem:[%s3 + $0x38] sm:$0xff]
    %v141 = vld [vmem:[%s3 + $0x40] sm:$0xff]
    %v142 = vld [vmem:[%s3 + $0x48] sm:$0xff]
    %v143 = vld [vmem:[%s3 + $0x50] sm:$0xff]
    %v144 = vld [vmem:[%s3 + $0x58] sm:$0xff]
    %v145 = vld [vmem:[%s3 + $0x60] sm:$0xff]
    %v146 = vld [vmem:[%s3 + $0x68] sm:$0xff]
    %v147 = vld [vmem:[%s3 + $0x70] sm:$0xff]
    %v148 = vld [vmem:[%s3 + $0x78] sm:$0xff]
    %v149 = vld [vmem:[%s4] sm:$0x1]
    %v151 = vlaneseq
    %v152 = vshrl.u32 %v151, 7
    %v153 = vsub.s32 0, %v152
    %v154 = vrot.slane %v149, %v153
    %156 = vmatprep.subr.mxu0 0.0
    %157 = vmatpush1.msra.mxu0 %v133
    %158 = vmatprep.subr.mxu0 0.0
    %159 = vmatpush1.msra.mxu0 %v134
    %160 = vmatprep.subr.mxu0 0.0
    %161 = vmatpush1.msra.mxu0 %v135
    %162 = vmatprep.subr.mxu0 0.0
    %163 = vmatpush1.msra.mxu0 %v136
    %164 = vmatprep.subr.mxu0 0.0
    %165 = vmatpush1.msra.mxu0 %v137
    %166 = vmatprep.subr.mxu0 0.0
    %167 = vmatpush1.msra.mxu0 %v138
    %168 = vmatprep.subr.mxu0 0.0
    %169 = vmatpush1.msra.mxu0 %v139
    %170 = vmatprep.subr.mxu0 0.0
    %171 = vmatpush1.msra.mxu0 %v140
    %172 = vmatprep.subr.mxu0 0.0
    %173 = vmatpush1.msra.mxu0 %v141
    %174 = vmatprep.subr.mxu0 0.0
    %175 = vmatpush1.msra.mxu0 %v142
    %176 = vmatprep.subr.mxu0 0.0
    %177 = vmatpush1.msra.mxu0 %v143
    %178 = vmatprep.subr.mxu0 0.0
    %179 = vmatpush1.msra.mxu0 %v144
    %180 = vmatprep.subr.mxu0 0.0
    %181 = vmatpush1.msra.mxu0 %v145
    %182 = vmatprep.subr.mxu0 0.0
    %183 = vmatpush1.msra.mxu0 %v146
    %184 = vmatprep.subr.mxu0 0.0
    %185 = vmatpush1.msra.mxu0 %v147
    %186 = vmatprep.subr.mxu0 0.0
    %187 = vmatpush1.msra.mxu0 %v148
    %188 = vmatprep.subr.mxu0 0.0
    %189 = vmatpush1.msra.mxu0 0.0
    %190 = vmatprep.subr.mxu0 0.0
    %191 = vmatpush1.msra.mxu0 0.0
    %192 = vmatprep.subr.mxu0 0.0
    %193 = vmatpush1.msra.mxu0 0.0
    %194 = vmatprep.subr.mxu0 0.0
    %195 = vmatpush1.msra.mxu0 0.0
    %196 = vmatprep.subr.mxu0 0.0
    %197 = vmatpush1.msra.mxu0 0.0
    %198 = vmatprep.subr.mxu0 0.0
    %199 = vmatpush1.msra.mxu0 0.0
    %200 = vmatprep.subr.mxu0 0.0
    %201 = vmatpush1.msra.mxu0 0.0
    %202 = vmatprep.subr.mxu0 0.0
    %203 = vmatpush1.msra.mxu0 0.0
    %204 = vmatprep.subr.mxu0 0.0
    %205 = vmatpush1.msra.mxu0 0.0
    %206 = vmatprep.subr.mxu0 0.0
    %207 = vmatpush1.msra.mxu0 0.0
    %208 = vmatprep.subr.mxu0 0.0
    %209 = vmatpush1.msra.mxu0 0.0
    %210 = vmatprep.subr.mxu0 0.0
    %211 = vmatpush1.msra.mxu0 0.0
    %212 = vmatprep.subr.mxu0 0.0
    %213 = vmatpush1.msra.mxu0 0.0
    %214 = vmatprep.subr.mxu0 0.0
    %215 = vmatpush1.msra.mxu0 0.0
    %216 = vmatprep.subr.mxu0 0.0
    %217 = vmatpush1.msra.mxu0 0.0
    %218 = vmatprep.subr.mxu0 0.0
    %219 = vmatpush1.msra.mxu0 0.0
    %220 = vmatprep.mubr.f32.mxu0 0.0
    %221 = vmatmul.mubr.f32.gmra.mrb[0].mxu0 %v132
    %v222 = vpop.f32.mrb[0].mxu0
    %v223 = vadd.f32 %v154, %v222
    %v224 = vpop.f32.mrb[0].mxu0
    %225 = vdwg.mxu0
    %226 = vst [vmem:[#allocation5] sm:$0x3] %v223
    // Predicated region
    $region26: #{mlp_head_forward.1} parent=1 // pred_check
      _
    $region27: #{mlp_head_forward.1} parent=1 // pred_check_branch
      %228 = sbr.rel (0) target = $region29
    $region28: #{mlp_head_forward.1} parent=1 // pred_region
      %s230 = ssub.s32 32, 32
      %231 = vsyncadd [#allocation4], %s230
      %s233 = sshll.u32 [#allocation5], 4
      %s234 = int_to_ptr.vmem [resolvable:$true] %s233
      %236 = dma.vmem_to_hbm [thread:$0]  %s234, 32, %s5, [#allocation4]
    $region29: #{mlp_head_forward.1} parent=1 // pred_fallthru
      _
    // Predicated region
    $region30: #{mlp_head_forward.1} parent=1 // pred_check
      _
    $region31: #{mlp_head_forward.1} parent=1 // pred_check_branch
      %238 = sbr.rel (0) target = $region33
    $region32: #{mlp_head_forward.1} parent=1 // pred_region
      %239 = dma.done [#allocation4], 32
    $region33: #{mlp_head_forward.1} parent=1 // pred_fallthru
      _
    %240 = vsyncpa [#allocation3], 1
    %241 = vsyncpa [#allocation4], 1

</llo_original>
